<compile_context>
chip_gen: v7x
topology: tpu7x:2x2x1
jax: 0.10.0
libtpu: 0.0.40
codegen_flags: <defaults>
</compile_context>

<pallas_src>
import jax
import jax.numpy as jnp
from jax.experimental import pallas as pl
from jax.experimental.pallas import tpu as pltpu


def _round_up(x, m):
    return (x + m - 1) // m * m


def _classifier_kernel(x_ref, w1_ref, b1_ref, wh_ref, bh_ref, out_ref):
    # grid = (batch tiles [parallel], hidden tiles [arbitrary / reduction])
    j = pl.program_id(1)

    # Output tile is VMEM-resident across the reduction axis (its block index is
    # constant in j): initialize once to the fused head bias, then accumulate.
    @pl.when(j == 0)
    def _():
        out_ref[...] = jnp.broadcast_to(bh_ref[...], out_ref.shape)

    # fc1 slice for this hidden tile: (TB, K_pad) @ (K_pad, TH), bf16 in, f32 acc.
    h = jnp.dot(x_ref[...], w1_ref[...], preferred_element_type=jnp.float32)
    h = jnp.maximum(h + b1_ref[...], 0.0)          # bias + ReLU in f32
    # dropout(p=0.1): identity at inference.

    # Fused heads: (TB, TH) @ (TH, N_pad=128); accumulate into the resident
    # f32 output tile (single lane-dense 128-wide store on writeback).
    out_ref[...] += jnp.dot(h.astype(jnp.bfloat16), wh_ref[...],
                            preferred_element_type=jnp.float32)


def pack_params(params):
    """Concatenate+pad head weights, pad fc1 along K (sublane only), cast weights to bf16."""
    w1, b1, wemo, bemo, wsent, bsent = params
    K, H = w1.shape
    E = wemo.shape[1]
    S = wsent.shape[1]
    K_pad = _round_up(K, 16)          # bf16 sublane multiple only — no 128 padding
    N = E + S
    N_pad = _round_up(N, 128)

    w1_p = jnp.zeros((K_pad, H), jnp.bfloat16).at[:K, :].set(w1.astype(jnp.bfloat16))
    b1_p = b1.reshape(1, H).astype(jnp.float32)

    wh = jnp.concatenate([wemo, wsent], axis=1).astype(jnp.bfloat16)      # (H, E+S)
    wh_p = jnp.zeros((H, N_pad), jnp.bfloat16).at[:, :N].set(wh)
    bh = jnp.concatenate([bemo.reshape(1, E), bsent.reshape(1, S)], axis=1)
    bh_p = jnp.zeros((1, N_pad), jnp.float32).at[:, :N].set(bh.astype(jnp.float32))

    dims = (K, K_pad, H, E, S, N_pad)
    return (w1_p, b1_p, wh_p, bh_p), dims


def _pick_batch_tile(B_pad16):
    """Small batch: one full-batch tile. Large batch: per-generation MXU-matched tile."""
    if B_pad16 <= 256:
        return B_pad16
    kind = ""
    try:
        kind = jax.devices()[0].device_kind.lower()
    except Exception:
        pass
    # v5e's MXU is 4x128^2 -> 128-row tiles; v6e/v7x have 256-wide MXUs -> 256.
    return 128 if "v5" in kind else 256


def classifier_v1_forward(x, packed, dims, *, num_emo=6, num_emo_classes=4):
    """x: (B, input_dim) f32. Returns (emo (B, num_emo, num_emo_classes), sent (B, S))."""
    w1_p, b1_p, wh_p, bh_p = packed
    K, K_pad, H, E, S, N_pad = dims
    B = x.shape[0]

    # Pad batch to a bf16 sublane multiple, then to a multiple of the batch tile.
    B_pad = _round_up(B, 16)
    TB = _pick_batch_tile(B_pad)
    B_pad = _round_up(B_pad, TB)

    # x lands in HBM already padded and cast to bf16 (halves x DMA bytes,
    # removes the in-kernel f32->bf16 cast).
    x_p = jnp.zeros((B_pad, K_pad), jnp.bfloat16).at[:B, :K].set(x.astype(jnp.bfloat16))

    # Hidden tile: largest slab that still leaves >=2 reduction steps so the
    # weight DMA overlaps MXU compute while minimizing per-grid-step overhead.
    TH = next((t for t in (1024, 512, 256, 128) if H % t == 0 and H // t >= 2), H)
    n_b = B_pad // TB
    n_h = H // TH

    out = pl.pallas_call(
        _classifier_kernel,
        out_shape=jax.ShapeDtypeStruct((B_pad, N_pad), jnp.float32),
        grid_spec=pltpu.PrefetchScalarGridSpec(
            num_scalar_prefetch=0,
            grid=(n_b, n_h),
            in_specs=[
                pl.BlockSpec((TB, K_pad), lambda b, j: (b, 0)),   # x (bf16)
                pl.BlockSpec((K_pad, TH), lambda b, j: (0, j)),   # w1 tile (bf16)
                pl.BlockSpec((1, TH),     lambda b, j: (0, j)),   # b1 tile (f32)
                pl.BlockSpec((TH, N_pad), lambda b, j: (j, 0)),   # fused head weight tile (bf16)
                pl.BlockSpec((1, N_pad),  lambda b, j: (0, 0)),   # fused head bias (f32)
            ],
            out_specs=pl.BlockSpec((TB, N_pad), lambda b, j: (b, 0)),
        ),
        compiler_params=pltpu.CompilerParams(
            dimension_semantics=("parallel", "arbitrary")),
    )(x_p, w1_p, b1_p, wh_p, bh_p)

    emo = out[:B, :E].reshape(B, num_emo, num_emo_classes)   # glue slice/reshape
    sent = out[:B, E:E + S]
    return emo, sent


def init_params(key, input_dim, hidden_dim=512, num_emo=6, num_emo_classes=4,
                num_sent_classes=5):
    """nn.Linear-style init with the module's hidden_dim * 4."""
    H = hidden_dim * 4
    ks = jax.random.split(key, 6)

    def linear(kw, kb, fan_in, fan_out):
        bound = 1.0 / jnp.sqrt(fan_in)
        w = jax.random.uniform(kw, (fan_in, fan_out), jnp.float32, -bound, bound)
        b = jax.random.uniform(kb, (1, fan_out), jnp.float32, -bound, bound)
        return w, b

    w1, b1 = linear(ks[0], ks[1], input_dim, H)
    wemo, bemo = linear(ks[2], ks[3], H, num_emo * num_emo_classes)
    wsent, bsent = linear(ks[4], ks[5], H, num_sent_classes)
    return (w1, b1, wemo, bemo, wsent, bsent)


if __name__ == "__main__":
    key = jax.random.PRNGKey(0)
    k_x, k_p = jax.random.split(key)

    B, input_dim = 8, 32                      # hidden becomes 512*4 = 2048
    num_emo, num_emo_classes, num_sent = 6, 4, 5
    x = jax.random.normal(k_x, (B, input_dim), jnp.float32)
    params = init_params(k_p, input_dim, hidden_dim=512,
                         num_emo=num_emo, num_emo_classes=num_emo_classes,
                         num_sent_classes=num_sent)

    packed, dims = pack_params(params)        # one-time packing (bf16 weights in HBM)
    emo_out, sent_out = classifier_v1_forward(x, packed, dims,
                                              num_emo=num_emo,
                                              num_emo_classes=num_emo_classes)
    jax.block_until_ready((emo_out, sent_out))

    # --- reference checks -------------------------------------------------
    w1, b1, wemo, bemo, wsent, bsent = params

    # (a) same-numerics reference (bf16 weights/activations, f32 accumulation)
    xb = x.astype(jnp.bfloat16)
    h_bf = jnp.maximum(
        jnp.dot(xb, w1.astype(jnp.bfloat16), preferred_element_type=jnp.float32) + b1, 0.0)
    hb = h_bf.astype(jnp.bfloat16)
    emo_bf = (jnp.dot(hb, wemo.astype(jnp.bfloat16), preferred_element_type=jnp.float32)
              + bemo).reshape(-1, num_emo, num_emo_classes)
    sent_bf = (jnp.dot(hb, wsent.astype(jnp.bfloat16), preferred_element_type=jnp.float32)
               + bsent)

    # (b) full-f32 module semantics (looser tolerance: bf16 weight storage)
    h_f32 = jnp.maximum(x @ w1 + b1, 0.0)
    emo_f32 = (h_f32 @ wemo + bemo).reshape(-1, num_emo, num_emo_classes)
    sent_f32 = h_f32 @ wsent + bsent

    assert emo_out.shape == (B, num_emo, num_emo_classes)
    assert sent_out.shape == (B, num_sent)
    assert jnp.allclose(emo_out, emo_bf, atol=1e-2, rtol=1e-2)
    assert jnp.allclose(sent_out, sent_bf, atol=1e-2, rtol=1e-2)
    assert jnp.allclose(emo_out, emo_f32, atol=5e-2, rtol=5e-2)
    assert jnp.allclose(sent_out, sent_f32, atol=5e-2, rtol=5e-2)

    print("KERNEL_OK")
</pallas_src>

<mosaic_0001>
module attributes {stable_mosaic.version = 11 : i64} {
  func.func @_classifier_kernel(%arg0: i32, %arg1: i32, %arg2: memref<16x32xbf16, #tpu.memory_space<vmem>>, %arg3: memref<32x1024xbf16, #tpu.memory_space<vmem>>, %arg4: memref<1x1024xf32, #tpu.memory_space<vmem>>, %arg5: memref<1024x128xbf16, #tpu.memory_space<vmem>>, %arg6: memref<1x128xf32, #tpu.memory_space<vmem>>, %arg7: memref<16x128xf32, #tpu.memory_space<vmem>>) attributes {dimension_semantics = [#tpu.dimension_semantics<parallel>, #tpu.dimension_semantics<arbitrary>], iteration_bounds = array<i64: 1, 2>, scalar_prefetch = 0 : i64, scratch_operands = 0 : i64, tpu.core_type = #tpu.core_type<tc>, window_params = [{transform_indices = @transform_0, window_bounds = array<i64: 16, 32>}, {transform_indices = @transform_1, window_bounds = array<i64: 32, 1024>}, {transform_indices = @transform_2, window_bounds = array<i64: 1, 1024>}, {transform_indices = @transform_3, window_bounds = array<i64: 1024, 128>}, {pipeline_mode = #tpu.pipeline_mode<synchronous>, transform_indices = @transform_4, window_bounds = array<i64: 1, 128>}, {transform_indices = @transform_5, window_bounds = array<i64: 16, 128>}]} {
    %c0_i32 = arith.constant 0 : i32
    %0 = arith.cmpi eq, %arg1, %c0_i32 : i32
    %1 = arith.extui %0 : i1 to i32
    %c0_i32_0 = arith.constant 0 : i32
    %2 = arith.cmpi ne, %1, %c0_i32_0 : i32
    scf.if %2 {
      %c0_14 = arith.constant 0 : index
      %c0_15 = arith.constant 0 : index
      %17 = vector.load %arg6[%c0_14, %c0_15] : memref<1x128xf32, #tpu.memory_space<vmem>>, vector<1x128xf32>
      %18 = vector.shape_cast %17 : vector<1x128xf32> to vector<1x128xf32>
      %19 = vector.broadcast %18 : vector<1x128xf32> to vector<16x128xf32>
      %c0_16 = arith.constant 0 : index
      %c0_17 = arith.constant 0 : index
      %20 = vector.load %arg7[%c0_16, %c0_17] : memref<16x128xf32, #tpu.memory_space<vmem>>, vector<16x128xf32>
      tpu.vector_store %arg7[%c0_16, %c0_17], %19 {strides = array<i32>} : memref<16x128xf32, #tpu.memory_space<vmem>>, vector<16x128xf32>,
    } else {
    }
    %c0 = arith.constant 0 : index
    %c0_1 = arith.constant 0 : index
    %3 = vector.load %arg2[%c0, %c0_1] : memref<16x32xbf16, #tpu.memory_space<vmem>>, vector<16x32xbf16>
    %c0_2 = arith.constant 0 : index
    %c0_3 = arith.constant 0 : index
    %4 = vector.load %arg3[%c0_2, %c0_3] : memref<32x1024xbf16, #tpu.memory_space<vmem>>, vector<32x1024xbf16>
    %cst = arith.constant dense<0.000000e+00> : vector<16x1024xf32>
    %5 = tpu.matmul %3, %4, %cst {dimension_numbers = #tpu.dot_dimension_numbers<[1], [0], [0], [1], [0, 0, 1, 1], [], []>} : vector<16x32xbf16>, vector<32x1024xbf16>, vector<16x1024xf32> -> vector<16x1024xf32>
    %c0_4 = arith.constant 0 : index
    %c0_5 = arith.constant 0 : index
    %6 = vector.load %arg4[%c0_4, %c0_5] : memref<1x1024xf32, #tpu.memory_space<vmem>>, vector<1x1024xf32>
    %7 = vector.broadcast %6 : vector<1x1024xf32> to vector<16x1024xf32>
    %8 = arith.addf %5, %7 : vector<16x1024xf32>
    %cst_6 = arith.constant 0.000000e+00 : f32
    %9 = vector.broadcast %cst_6 : f32 to vector<16x1024xf32>
    %10 = arith.maximumf %8, %9 : vector<16x1024xf32>
    %c0_7 = arith.constant 0 : index
    %c0_8 = arith.constant 0 : index
    %11 = vector.load %arg7[%c0_7, %c0_8] : memref<16x128xf32, #tpu.memory_space<vmem>>, vector<16x128xf32>
    %12 = arith.truncf %10 : vector<16x1024xf32> to vector<16x1024xbf16>
    %c0_9 = arith.constant 0 : index
    %c0_10 = arith.constant 0 : index
    %13 = vector.load %arg5[%c0_9, %c0_10] : memref<1024x128xbf16, #tpu.memory_space<vmem>>, vector<1024x128xbf16>
    %cst_11 = arith.constant dense<0.000000e+00> : vector<16x128xf32>
    %14 = tpu.matmul %12, %13, %cst_11 {dimension_numbers = #tpu.dot_dimension_numbers<[1], [0], [0], [1], [0, 0, 1, 1], [], []>} : vector<16x1024xbf16>, vector<1024x128xbf16>, vector<16x128xf32> -> vector<16x128xf32>
    %15 = arith.addf %11, %14 : vector<16x128xf32>
    %c0_12 = arith.constant 0 : index
    %c0_13 = arith.constant 0 : index
    %16 = vector.load %arg7[%c0_12, %c0_13] : memref<16x128xf32, #tpu.memory_space<vmem>>, vector<16x128xf32>
    tpu.vector_store %arg7[%c0_12, %c0_13], %15 {strides = array<i32>} : memref<16x128xf32, #tpu.memory_space<vmem>>, vector<16x128xf32>,
    return
  }
  func.func @transform_0(%arg0: i32, %arg1: i32) -> (i32, i32) {
    %c0_i32 = arith.constant 0 : i32
    %c0_i32_0 = arith.constant 0 : i32
    return %arg0, %c0_i32 : i32, i32
  }
  func.func @transform_1(%arg0: i32, %arg1: i32) -> (i32, i32) {
    %c0_i32 = arith.constant 0 : i32
    %c0_i32_0 = arith.constant 0 : i32
    return %c0_i32, %arg1 : i32, i32
  }
  func.func @transform_2(%arg0: i32, %arg1: i32) -> (i32, i32) {
    %c0_i32 = arith.constant 0 : i32
    %c0_i32_0 = arith.constant 0 : i32
    return %c0_i32, %arg1 : i32, i32
  }
  func.func @transform_3(%arg0: i32, %arg1: i32) -> (i32, i32) {
    %c0_i32 = arith.constant 0 : i32
    %c0_i32_0 = arith.constant 0 : i32
    return %arg1, %c0_i32 : i32, i32
  }
  func.func @transform_4(%arg0: i32, %arg1: i32) -> (i32, i32) {
    %c0_i32 = arith.constant 0 : i32
    %c0_i32_0 = arith.constant 0 : i32
    %c0_i32_1 = arith.constant 0 : i32
    return %c0_i32, %c0_i32_0 : i32, i32
  }
  func.func @transform_5(%arg0: i32, %arg1: i32) -> (i32, i32) {
    %c0_i32 = arith.constant 0 : i32
    %c0_i32_0 = arith.constant 0 : i32
    return %arg0, %c0_i32 : i32, i32
  }
}

</mosaic_0001>

<llo_original>
// kernel: tpu_custom_call.1
$region0: #{tpu_custom_call.1}
  #allocation0 [shape = 'u32[]', space=smem, size = 0x4, offset = 0x4, fixed_abs, tag = 'smem constant byte address 0x4 - core index']
  #allocation1 [shape = 'u32[144,128]{1,0:T(1,128)}', space=vmem, size = 0x12000, scoped, tag = 'internal scratch']
  %s0 = inlined_call_operand.hbm [shape: bf16[16,32], index: 0, kind: input, shape index: {}]
  %s1 = inlined_call_operand.hbm [shape: bf16[32,2048], index: 1, kind: input, shape index: {}]
  %s2 = inlined_call_operand.hbm [shape: f32[1,2048], index: 2, kind: input, shape index: {}]
  %s3 = inlined_call_operand.hbm [shape: bf16[2048,128], index: 3, kind: input, shape index: {}]
  %s4 = inlined_call_operand.vmem [shape: f32[1,128], index: 4, kind: input, shape index: {}]
  %s5 = inlined_call_operand.hbm [shape: f32[16,128], index: 5, kind: output, shape index: {}]
  %s6 = sld [smem:[#allocation0]]
  $region73: #{tpu_custom_call.1} parent=0
    _
  %s8 = ssub.s32 1, %s6
  %s9 = scalar_select 0, %s8, %s6
  $region1: #{tpu_custom_call.1} parent=0
    #allocation2 [shape = 'u8[4096]{0}', space=vmem, size = 0x1000, scoped, tag = 'input window, operand 0, single buffered']
    #allocation3 [shape = 's32[2]{0}', space=sflag, size = 0x8, scoped, tag = 'scoped memory for tpu_custom_call.1']
    #allocation4 [shape = 's32[2]{0}', space=sflag, size = 0x8, scoped, tag = 'scoped memory for tpu_custom_call.1']
    #allocation5 [shape = 'u8[131072]{0}', space=vmem, size = 0x20000, scoped, tag = 'input window, operand 1']
    #allocation6 [shape = 's32[2]{0}', space=sflag, size = 0x8, scoped, tag = 'scoped memory for tpu_custom_call.1']
    #allocation7 [shape = 'u8[8192]{0}', space=vmem, size = 0x2000, scoped, tag = 'input window, operand 2']
    #allocation8 [shape = 'u8[524288]{0}', space=vmem, size = 0x80000, scoped, tag = 'input window, operand 3']
    #allocation9 [shape = 's32[2]{0}', space=sflag, size = 0x8, scoped, tag = 'scoped memory for tpu_custom_call.1']
    #allocation10 [shape = 'u8[8192]{0}', space=vmem, size = 0x2000, scoped, tag = 'output window, operand 0, single buffered']
    %10 = vsyncpa [#allocation3], 0
    %11 = vsyncpa [#allocation6], 0
    %s12 = scalar_lea.sflag [#allocation6], 1
    %13 = vsyncpa %s12, 0
    %14 = vsyncpa [#allocation9], 0
    %s15 = scalar_lea.sflag [#allocation9], 1
    %16 = vsyncpa %s15, 0
    %17 = vsyncpa [#allocation4], 0
    loop: start=0, step=1, limit=4
    $region2: #{tpu_custom_call.1} parent=1 // loop_pre_header
      _
    $region3: #{tpu_custom_call.1} parent=1 // loop_header
      %s19 = sphi 0, %s23
      %p20 = scmp.ge.s32.totalorder %s19, 4
      %s26 = sphi 0, %s38
      %s27 = sphi 0, %s34
      %s28 = sphi 0, %s26
      %s29 = sphi 0, %s27
      %s30 = sphi 0, %s28
      %s31 = sphi 0, %s29
      %s41 = sphi 0, %s43
      %s44 = sphi 0, %s41
      %s45 = sphi 0, %s44
      %s61 = sphi 0, %s45
      %s67 = sphi 0, %s69
      %s70 = sphi 0, %s67
      %s71 = sphi 0, %s70
      %s87 = sphi 0, %s71
      %s93 = sphi 0, %s95
      %s96 = sphi 0, %s93
      %s97 = sphi 0, %s96
      %s113 = sphi 0, %s97
      %s119 = sphi 0, %s121
      %s122 = sphi 0, %s119
      %s123 = sphi 0, %s122
      %s139 = sphi 0, %s123
      %s143 = sphi 0, %s143
      %s145 = sphi 0, %s143
      %s146 = sphi 0, %s145
      %s160 = sphi 0, %s146
      %s166 = sphi 0, %s168
      %s169 = sphi 0, %s166
      %s170 = sphi 0, %s169
      %s186 = sphi 0, %s170
    $region4: #{tpu_custom_call.1} parent=1 // loop_header_branch
      %22 = sbr.rel (%p20) target = $region8
    $region5: #{tpu_custom_call.1} parent=1 // loop_body
      %s24 = ssub.s32 %s19, 1
      %s25 = ssub.s32 %s19, 2
      %s32 = sadd.s32 1, %s27
      %p33 = scmp.ge.s32.totalorder %s32, 2
      %s34 = scalar_select %p33, 0, %s32
      %s35 = sadd.s32 1, %s26
      %s36 = scalar_select %p33, %s35, %s26
      %p37 = scmp.ge.s32.totalorder %s36, 1
      %s38 = scalar_select %p37, 0, %s36
      %s39 = ssub.s32 %s26, %s38
      %p40 = scmp.eq.s32.totalorder %s39, 0
      %s42 = sadd.s32 %s41, 1
      %s43 = scalar_select %p40, %s41, %s42
      %p46 = pneg %p40
      %p47 = scmp.eq.s32.totalorder %s19, 1
      %p48 = por %p46, %p47
      %p49 = scmp.ne.s32.totalorder %s41, %s44
      %p50 = scmp.eq.s32.totalorder %s19, 0
      %p51 = por %p49, %p50
      %p52 = scmp.ne.s32.totalorder %s41, %s44
      %p53 = scmp.eq.s32.totalorder %s24, 1
      %p54 = por %p52, %p53
      %p55 = scmp.ne.s32.totalorder %s44, %s45
      %p56 = scmp.eq.s32.totalorder %s24, 0
      %p57 = por %p55, %p56
      %p58 = scmp.ne.s32.totalorder %s44, %s45
      %p59 = scmp.eq.s32.totalorder %s25, 1
      %p60 = por %p58, %p59
      %p62 = scmp.ne.s32.totalorder %s45, %s61
      %p63 = scmp.eq.s32.totalorder %s25, 0
      %p64 = por %p62, %p63
      %s65 = ssub.s32 %s27, %s34
      %p66 = scmp.eq.s32.totalorder %s65, 0
      %s68 = sadd.s32 %s67, 1
      %s69 = scalar_select %p66, %s67, %s68
      %p72 = pneg %p66
      %p73 = scmp.eq.s32.totalorder %s19, 1
      %p74 = por %p72, %p73
      %p75 = scmp.ne.s32.totalorder %s67, %s70
      %p76 = scmp.eq.s32.totalorder %s19, 0
      %p77 = por %p75, %p76
      %p78 = scmp.ne.s32.totalorder %s67, %s70
      %p79 = scmp.eq.s32.totalorder %s24, 1
      %p80 = por %p78, %p79
      %p81 = scmp.ne.s32.totalorder %s70, %s71
      %p82 = scmp.eq.s32.totalorder %s24, 0
      %p83 = por %p81, %p82
      %p84 = scmp.ne.s32.totalorder %s70, %s71
      %p85 = scmp.eq.s32.totalorder %s25, 1
      %p86 = por %p84, %p85
      %p88 = scmp.ne.s32.totalorder %s71, %s87
      %p89 = scmp.eq.s32.totalorder %s25, 0
      %p90 = por %p88, %p89
      %s91 = ssub.s32 %s27, %s34
      %p92 = scmp.eq.s32.totalorder %s91, 0
      %s94 = sadd.s32 %s93, 1
      %s95 = scalar_select %p92, %s93, %s94
      %p98 = pneg %p92
      %p99 = scmp.eq.s32.totalorder %s19, 1
      %p100 = por %p98, %p99
      %p101 = scmp.ne.s32.totalorder %s93, %s96
      %p102 = scmp.eq.s32.totalorder %s19, 0
      %p103 = por %p101, %p102
      %p104 = scmp.ne.s32.totalorder %s93, %s96
      %p105 = scmp.eq.s32.totalorder %s24, 1
      %p106 = por %p104, %p105
      %p107 = scmp.ne.s32.totalorder %s96, %s97
      %p108 = scmp.eq.s32.totalorder %s24, 0
      %p109 = por %p107, %p108
      %p110 = scmp.ne.s32.totalorder %s96, %s97
      %p111 = scmp.eq.s32.totalorder %s25, 1
      %p112 = por %p110, %p111
      %p114 = scmp.ne.s32.totalorder %s97, %s113
      %p115 = scmp.eq.s32.totalorder %s25, 0
      %p116 = por %p114, %p115
      %s117 = ssub.s32 %s27, %s34
      %p118 = scmp.eq.s32.totalorder %s117, 0
      %s120 = sadd.s32 %s119, 1
      %s121 = scalar_select %p118, %s119, %s120
      %p124 = pneg %p118
      %p125 = scmp.eq.s32.totalorder %s19, 1
      %p126 = por %p124, %p125
      %p127 = scmp.ne.s32.totalorder %s119, %s122
      %p128 = scmp.eq.s32.totalorder %s19, 0
      %p129 = por %p127, %p128
      %p130 = scmp.ne.s32.totalorder %s119, %s122
      %p131 = scmp.eq.s32.totalorder %s24, 1
      %p132 = por %p130, %p131
      %p133 = scmp.ne.s32.totalorder %s122, %s123
      %p134 = scmp.eq.s32.totalorder %s24, 0
      %p135 = por %p133, %p134
      %p136 = scmp.ne.s32.totalorder %s122, %s123
      %p137 = scmp.eq.s32.totalorder %s25, 1
      %p138 = por %p136, %p137
      %p140 = scmp.ne.s32.totalorder %s123, %s139
      %p141 = scmp.eq.s32.totalorder %s25, 0
      %p142 = por %p140, %p141
      %s144 = sadd.s32 %s143, 1
      %p147 = scmp.eq.s32.totalorder %s19, 1
      %p148 = scmp.ne.s32.totalorder %s143, %s145
      %p149 = scmp.eq.s32.totalorder %s19, 0
      %p150 = por %p148, %p149
      %p151 = scmp.ne.s32.totalorder %s143, %s145
      %p152 = scmp.eq.s32.totalorder %s24, 1
      %p153 = por %p151, %p152
      %p154 = scmp.ne.s32.totalorder %s145, %s146
      %p155 = scmp.eq.s32.totalorder %s24, 0
      %p156 = por %p154, %p155
      %p157 = scmp.ne.s32.totalorder %s145, %s146
      %p158 = scmp.eq.s32.totalorder %s25, 1
      %p159 = por %p157, %p158
      %p161 = scmp.ne.s32.totalorder %s146, %s160
      %p162 = scmp.eq.s32.totalorder %s25, 0
      %p163 = por %p161, %p162
      %s164 = ssub.s32 %s26, %s38
      %p165 = scmp.eq.s32.totalorder %s164, 0
      %s167 = sadd.s32 %s166, 1
      %s168 = scalar_select %p165, %s166, %s167
      %p171 = pneg %p165
      %p172 = scmp.eq.s32.totalorder %s19, 1
      %p173 = por %p171, %p172
      %p174 = scmp.ne.s32.totalorder %s166, %s169
      %p175 = scmp.eq.s32.totalorder %s19, 0
      %p176 = por %p174, %p175
      %p177 = scmp.ne.s32.totalorder %s166, %s169
      %p178 = scmp.eq.s32.totalorder %s24, 1
      %p179 = por %p177, %p178
      %p180 = scmp.ne.s32.totalorder %s169, %s170
      %p181 = scmp.eq.s32.totalorder %s24, 0
      %p182 = por %p180, %p181
      %p183 = scmp.ne.s32.totalorder %s169, %s170
      %p184 = scmp.eq.s32.totalorder %s25, 1
      %p185 = por %p183, %p184
      %p187 = scmp.ne.s32.totalorder %s170, %s186
      %p188 = scmp.eq.s32.totalorder %s25, 0
      %p189 = por %p187, %p188
      %p190 = scmp.le.s32.totalorder 1, %s19
      %p191 = scmp.lt.s32.totalorder %s19, 3
      %p192 = pnand %p190, %p191
      %p193 = pneg %p192
      // Predicated region
      $region9: #{tpu_custom_call.1} parent=5 // pred_check
        _
      $region10: #{tpu_custom_call.1} parent=5 // pred_check_branch
        %195 = sbr.rel (%p192) target = $region12
      $region11: #{tpu_custom_call.1} parent=5 // pred_region
        %s196 = ssub.s32 %s19, 1
        // Predicated region
        $region13: #{tpu_custom_call.1} parent=11 // pred_check
          %p197 = pneg %p57
        $region14: #{tpu_custom_call.1} parent=11 // pred_check_branch
          %199 = sbr.rel (%p197) target = $region16
        $region15: #{tpu_custom_call.1} parent=11 // pred_region
          %s200 = smul.u32 2, %s28
          %s202 = ssub.s32 128, 128
          %203 = vsyncadd [#allocation3], %s202
          %s204 = smul.addr %s200, 64
          %s205 = scalar_lea.hbm %s0, %s204
          %s206 = sshll.u32 [#allocation2], 4
          %s207 = int_to_ptr.vmem [resolvable:$true] %s206
          %212 = dma.hbm_to_vmem [thread:$0]  %s205, 128, %s207, [#allocation3], 64, 64, 4
        $region16: #{tpu_custom_call.1} parent=11 // pred_fallthru
          _
        // Predicated region
        $region17: #{tpu_custom_call.1} parent=11 // pred_check
          %p213 = pneg %p156
        $region18: #{tpu_custom_call.1} parent=11 // pred_check_branch
          %215 = sbr.rel (%p213) target = $region20
        $region19: #{tpu_custom_call.1} parent=11 // pred_region
          _
        $region20: #{tpu_custom_call.1} parent=11 // pred_fallthru
          _
      $region12: #{tpu_custom_call.1} parent=5 // pred_fallthru
        _
      %p216 = scmp.lt.s32.totalorder %s19, 2
      // Predicated region
      $region21: #{tpu_custom_call.1} parent=5 // pred_check
        %p217 = pneg %p216
      $region22: #{tpu_custom_call.1} parent=5 // pred_check_branch
        %219 = sbr.rel (%p217) target = $region24
      $region23: #{tpu_custom_call.1} parent=5 // pred_region
        // Predicated region
        $region25: #{tpu_custom_call.1} parent=23 // pred_check
          %p220 = pneg %p77
        $region26: #{tpu_custom_call.1} parent=23 // pred_check_branch
          %222 = sbr.rel (%p220) target = $region28
        $region27: #{tpu_custom_call.1} parent=23 // pred_region
          %s223 = sand.u32 %s19, 1
          %s224 = scalar_lea.sflag [#allocation6], %s223
          %s225 = sand.u32 %s67, 1
          %s226 = smul.addr %s225, 128
          %s227 = scalar_lea.vmem [#allocation5], %s226
          %s228 = smul.u32 8, %s27
          %s230 = ssub.s32 2048, 2048
          %231 = vsyncadd %s224, %s230
          %s232 = smul.addr %s228, 64
          %s233 = scalar_lea.hbm %s1, %s232
          %s234 = sshll.u32 %s227, 4
          %s235 = int_to_ptr.vmem [resolvable:$true] %s234
          %240 = dma.hbm_to_vmem [thread:$0]  %s233, 2048, %s235, %s224, 1024, 512, 32
        $region28: #{tpu_custom_call.1} parent=23 // pred_fallthru
          _
        // Predicated region
        $region29: #{tpu_custom_call.1} parent=23 // pred_check
          %p241 = pneg %p103
        $region30: #{tpu_custom_call.1} parent=23 // pred_check_branch
          %243 = sbr.rel (%p241) target = $region32
        $region31: #{tpu_custom_call.1} parent=23 // pred_region
          %s244 = sand.u32 %s19, 1
          %s245 = scalar_lea.sflag [#allocation6], %s244
          %s246 = sand.u32 %s93, 1
          %s247 = smul.addr %s246, 8
          %s248 = scalar_lea.vmem [#allocation7], %s247
          %s249 = smul.u32 8, %s27
          %s251 = ssub.s32 128, 128
          %252 = vsyncadd %s245, %s251
          %s253 = smul.addr %s249, 16
          %s254 = scalar_lea.hbm %s2, %s253
          %s256 = sshll.u32 %s248, 4
          %s257 = int_to_ptr.vmem [resolvable:$true] %s256
          %259 = dma.hbm_to_vmem [thread:$0]  %s254, 128, %s257, %s245
        $region32: #{tpu_custom_call.1} parent=23 // pred_fallthru
          _
        // Predicated region
        $region33: #{tpu_custom_call.1} parent=23 // pred_check
          %p260 = pneg %p129
        $region34: #{tpu_custom_call.1} parent=23 // pred_check_branch
          %262 = sbr.rel (%p260) target = $region36
        $region35: #{tpu_custom_call.1} parent=23 // pred_region
          %s263 = sand.u32 %s119, 1
          %s264 = scalar_lea.sflag [#allocation9], %s263
          %s265 = sand.u32 %s119, 1
          %s266 = smul.addr %s265, 512
          %s267 = scalar_lea.vmem [#allocation8], %s266
          %s268 = smul.u32 128, %s27
          %s270 = ssub.s32 8192, 8192
          %271 = vsyncadd %s264, %s270
          %s272 = smul.addr %s268, 64
          %s273 = scalar_lea.hbm %s3, %s272
          %s274 = sshll.u32 %s267, 4
          %s275 = int_to_ptr.vmem [resolvable:$true] %s274
          %280 = dma.hbm_to_vmem [thread:$0]  %s273, 8192, %s275, %s264, 64, 64, 4
        $region36: #{tpu_custom_call.1} parent=23 // pred_fallthru
          _
      $region24: #{tpu_custom_call.1} parent=5 // pred_fallthru
        _
      %p281 = scmp.le.s32.totalorder 1, %s19
      %p282 = scmp.lt.s32.totalorder %s19, 3
      %p283 = pnand %p281, %p282
      %p284 = pneg %p283
      // Predicated region
      $region37: #{tpu_custom_call.1} parent=5 // pred_check
        _
      $region38: #{tpu_custom_call.1} parent=5 // pred_check_branch
        %286 = sbr.rel (%p283) target = $region40
      $region39: #{tpu_custom_call.1} parent=5 // pred_region
        %s287 = ssub.s32 %s19, 1
        // Predicated region
        $region41: #{tpu_custom_call.1} parent=39 // pred_check
          %p288 = pneg %p57
        $region42: #{tpu_custom_call.1} parent=39 // pred_check_branch
          %290 = sbr.rel (%p288) target = $region44
        $region43: #{tpu_custom_call.1} parent=39 // pred_region
          %291 = dma.done [#allocation3], 128
        $region44: #{tpu_custom_call.1} parent=39 // pred_fallthru
          _
        %s292 = sand.u32 %s24, 1
        %s293 = scalar_lea.sflag [#allocation6], %s292
        %s294 = sand.u32 %s70, 1
        %s295 = smul.addr %s294, 128
        %s296 = scalar_lea.vmem [#allocation5], %s295
        // Predicated region
        $region45: #{tpu_custom_call.1} parent=39 // pred_check
          %p297 = pneg %p83
        $region46: #{tpu_custom_call.1} parent=39 // pred_check_branch
          %299 = sbr.rel (%p297) target = $region48
        $region47: #{tpu_custom_call.1} parent=39 // pred_region
          %300 = dma.done %s293, 2048
        $region48: #{tpu_custom_call.1} parent=39 // pred_fallthru
          _
        %s301 = sand.u32 %s24, 1
        %s302 = scalar_lea.sflag [#allocation6], %s301
        %s303 = sand.u32 %s96, 1
        %s304 = smul.addr %s303, 8
        %s305 = scalar_lea.vmem [#allocation7], %s304
        // Predicated region
        $region49: #{tpu_custom_call.1} parent=39 // pred_check
          %p306 = pneg %p109
        $region50: #{tpu_custom_call.1} parent=39 // pred_check_branch
          %308 = sbr.rel (%p306) target = $region52
        $region51: #{tpu_custom_call.1} parent=39 // pred_region
          %309 = dma.done %s302, 128
        $region52: #{tpu_custom_call.1} parent=39 // pred_fallthru
          _
        %s310 = sand.u32 %s122, 1
        %s311 = scalar_lea.sflag [#allocation9], %s310
        %s312 = sand.u32 %s122, 1
        %s313 = smul.addr %s312, 512
        %s314 = scalar_lea.vmem [#allocation8], %s313
        // Predicated region
        $region53: #{tpu_custom_call.1} parent=39 // pred_check
          %p315 = pneg %p135
        $region54: #{tpu_custom_call.1} parent=39 // pred_check_branch
          %317 = sbr.rel (%p315) target = $region56
        $region55: #{tpu_custom_call.1} parent=39 // pred_region
          %318 = dma.done %s311, 8192
        $region56: #{tpu_custom_call.1} parent=39 // pred_fallthru
          _
        %p319 = pneg %p57
        %p320 = pneg %p54
        %s321 = sand.u32 %s24, 1
        %s322 = scalar_lea.sflag [#allocation6], %s321
        %s323 = sand.u32 %s70, 1
        %s324 = smul.addr %s323, 128
        %s325 = scalar_lea.vmem [#allocation5], %s324
        %p326 = pneg %p83
        %p327 = pneg %p80
        %s328 = sand.u32 %s24, 1
        %s329 = scalar_lea.sflag [#allocation6], %s328
        %s330 = sand.u32 %s96, 1
        %s331 = smul.addr %s330, 8
        %s332 = scalar_lea.vmem [#allocation7], %s331
        %p333 = pneg %p109
        %p334 = pneg %p106
        %s335 = sand.u32 %s122, 1
        %s336 = scalar_lea.sflag [#allocation9], %s335
        %s337 = sand.u32 %s122, 1
        %s338 = smul.addr %s337, 512
        %s339 = scalar_lea.vmem [#allocation8], %s338
        %p340 = pneg %p135
        %p341 = pneg %p132
        %p342 = pneg %p156
        %p343 = pneg %p153
        %p344 = pneg %p182
        %p345 = pneg %p179
        %s346 = smul.u32 2, %s28
        %s347 = smul.u32 8, %s29
        %s348 = smul.u32 8, %s29
        %s349 = smul.u32 128, %s29
        %s350 = smul.u32 2, %s28
        %p352 = scmp.eq.s32.totalorder %s29, 0
        // Predicated region
        $region57: #{tpu_custom_call.1} parent=39 // pred_check
          %p353 = pneg %p352
        $region58: #{tpu_custom_call.1} parent=39 // pred_check_branch
          %355 = sbr.rel (%p353) target = $region60
        $region59: #{tpu_custom_call.1} parent=39 // pred_region
          %v356 = vld [vmem:[%s4] sm:$0x1]
          %v358 = vlaneseq
          %v359 = vshrl.u32 %v358, 7
          %v360 = vsub.s32 0, %v359
          %v361 = vrot.slane %v356, %v360
          %363 = vst [vmem:[#allocation10] sm:$0xff] %v361
          %364 = vst [vmem:[#allocation10 + $0x8] sm:$0xff] %v361
        $region60: #{tpu_custom_call.1} parent=39 // pred_fallthru
          _
        %v365 = vld [vmem:[#allocation2] sm:$0xf]
        %v366 = vld [vmem:[#allocation2 + $0x4] sm:$0xf]
        %v367 = vld [vmem:[%s296] sm:$0xff]
        %v368 = vld [vmem:[%s296 + $0x8] sm:$0xff]
        %v369 = vld [vmem:[%s296 + $0x10] sm:$0xff]
        %v370 = vld [vmem:[%s296 + $0x18] sm:$0xff]
        %v371 = vld [vmem:[%s296 + $0x20] sm:$0xff]
        %v372 = vld [vmem:[%s296 + $0x28] sm:$0xff]
        %v373 = vld [vmem:[%s296 + $0x30] sm:$0xff]
        %v374 = vld [vmem:[%s296 + $0x38] sm:$0xff]
        %v375 = vld [vmem:[%s296 + $0x40] sm:$0xff]
        %v376 = vld [vmem:[%s296 + $0x48] sm:$0xff]
        %v377 = vld [vmem:[%s296 + $0x50] sm:$0xff]
        %v378 = vld [vmem:[%s296 + $0x58] sm:$0xff]
        %v379 = vld [vmem:[%s296 + $0x60] sm:$0xff]
        %v380 = vld [vmem:[%s296 + $0x68] sm:$0xff]
        %v381 = vld [vmem:[%s296 + $0x70] sm:$0xff]
        %v382 = vld [vmem:[%s296 + $0x78] sm:$0xff]
        %v383 = vld [vmem:[%s305] sm:$0xff]
        %v385 = vlaneseq
        %v386 = vshrl.u32 %v385, 7
        %v387 = vsub.s32 0, %v386
        %v388 = vrot.slane %v383, %v387
        %v389 = vlaneseq
        %v390 = vshrl.u32 %v389, 7
        %v391 = vsub.s32 1, %v390
        %v392 = vrot.slane %v383, %v391
        %v393 = vlaneseq
        %v394 = vshrl.u32 %v393, 7
        %v395 = vsub.s32 2, %v394
        %v396 = vrot.slane %v383, %v395
        %v397 = vlaneseq
        %v398 = vshrl.u32 %v397, 7
        %v399 = vsub.s32 3, %v398
        %v400 = vrot.slane %v383, %v399
        %v401 = vlaneseq
        %v402 = vshrl.u32 %v401, 7
        %v403 = vsub.s32 4, %v402
        %v404 = vrot.slane %v383, %v403
        %v405 = vlaneseq
        %v406 = vshrl.u32 %v405, 7
        %v407 = vsub.s32 5, %v406
        %v408 = vrot.slane %v383, %v407
        %v409 = vlaneseq
        %v410 = vshrl.u32 %v409, 7
        %v411 = vsub.s32 6, %v410
        %v412 = vrot.slane %v383, %v411
        %v413 = vlaneseq
        %v414 = vshrl.u32 %v413, 7
        %v415 = vsub.s32 7, %v414
        %v416 = vrot.slane %v383, %v415
        %v427 = vunpack.c.l.b16 %v365
        %v428 = vunpack.c.l.b16 %v366
        %v429 = vpack.c.b16 %v428, %v427
        %v446 = vunpack.c.l.b16 %v367
        %v447 = vunpack.c.h.b16 %v367
        %v448 = vunpack.c.l.b16 %v368
        %v449 = vunpack.c.h.b16 %v368
        %v450 = vunpack.c.l.b16 %v369
        %v451 = vunpack.c.h.b16 %v369
        %v452 = vunpack.c.l.b16 %v370
        %v453 = vunpack.c.h.b16 %v370
        %v454 = vunpack.c.l.b16 %v371
        %v455 = vunpack.c.h.b16 %v371
        %v456 = vunpack.c.l.b16 %v372
        %v457 = vunpack.c.h.b16 %v372
        %v458 = vunpack.c.l.b16 %v373
        %v459 = vunpack.c.h.b16 %v373
        %v460 = vunpack.c.l.b16 %v374
        %v461 = vunpack.c.h.b16 %v374
        %v462 = vunpack.c.l.b16 %v375
        %v463 = vunpack.c.h.b16 %v375
        %v464 = vunpack.c.l.b16 %v376
        %v465 = vunpack.c.h.b16 %v376
        %v466 = vunpack.c.l.b16 %v377
        %v467 = vunpack.c.h.b16 %v377
        %v468 = vunpack.c.l.b16 %v378
        %v469 = vunpack.c.h.b16 %v378
        %v470 = vunpack.c.l.b16 %v379
        %v471 = vunpack.c.h.b16 %v379
        %v472 = vunpack.c.l.b16 %v380
        %v473 = vunpack.c.h.b16 %v380
        %v474 = vunpack.c.l.b16 %v381
        %v475 = vunpack.c.h.b16 %v381
        %v476 = vunpack.c.l.b16 %v382
        %v477 = vunpack.c.h.b16 %v382
        %v478 = vpack.c.b16 %v454, %v446
        %v479 = vpack.c.b16 %v455, %v447
        %v480 = vpack.c.b16 %v456, %v448
        %v481 = vpack.c.b16 %v457, %v449
        %v482 = vpack.c.b16 %v458, %v450
        %v483 = vpack.c.b16 %v459, %v451
        %v484 = vpack.c.b16 %v460, %v452
        %v485 = vpack.c.b16 %v461, %v453
        %v486 = vpack.c.b16 %v470, %v462
        %v487 = vpack.c.b16 %v471, %v463
        %v488 = vpack.c.b16 %v472, %v464
        %v489 = vpack.c.b16 %v473, %v465
        %v490 = vpack.c.b16 %v474, %v466
        %v491 = vpack.c.b16 %v475, %v467
        %v492 = vpack.c.b16 %v476, %v468
        %v493 = vpack.c.b16 %v477, %v469
        %vm510 = vcmask 261120
        %v512 = vsel %vm510, %v429, 0
        %514 = vmatprep.subr.bf16.mxu0 %v479
        %515 = vmatpush1.bf16.msra.mxu0 %v478
        %516 = vmatprep.subr.bf16.mxu0 %v487
        %517 = vmatpush1.bf16.msra.mxu0 %v486
        %518 = vmatprep.subr.bf16.mxu0 0
        %519 = vmatpush1.bf16.msra.mxu0 0
        %520 = vmatprep.subr.bf16.mxu0 0
        %521 = vmatpush1.bf16.msra.mxu0 0
        %522 = vmatprep.subr.bf16.mxu0 0
        %523 = vmatpush1.bf16.msra.mxu0 0
        %524 = vmatprep.subr.bf16.mxu0 0
        %525 = vmatpush1.bf16.msra.mxu0 0
        %526 = vmatprep.subr.bf16.mxu0 0
        %527 = vmatpush1.bf16.msra.mxu0 0
        %528 = vmatprep.subr.bf16.mxu0 0
        %529 = vmatpush1.bf16.msra.mxu0 0
        %530 = vmatprep.subr.bf16.mxu0 0
        %531 = vmatpush1.bf16.msra.mxu0 0
        %532 = vmatprep.subr.bf16.mxu0 0
        %533 = vmatpush1.bf16.msra.mxu0 0
        %534 = vmatprep.subr.bf16.mxu0 0
        %535 = vmatpush1.bf16.msra.mxu0 0
        %536 = vmatprep.subr.bf16.mxu0 0
        %537 = vmatpush1.bf16.msra.mxu0 0
        %538 = vmatprep.subr.bf16.mxu0 0
        %539 = vmatpush1.bf16.msra.mxu0 0
        %540 = vmatprep.subr.bf16.mxu0 0
        %541 = vmatpush1.bf16.msra.mxu0 0
        %542 = vmatprep.subr.bf16.mxu0 0
        %543 = vmatpush1.bf16.msra.mxu0 0
        %544 = vmatprep.subr.bf16.mxu0 0
        %545 = vmatpush1.bf16.msra.mxu0 0
        %546 = vmatprep.mubr.bf16.mxu0 0
        %547 = vmatmul.mubr.bf16.gmra.mrb[0].mxu0 %v512
        %v548 = vpop.f32.mrb[0].mxu0
        %v549 = vadd.f32 %v388, %v548
        %v550 = vpop.f32.mrb[0].mxu0
        %v551 = vadd.f32 %v392, %v550
        %v552 = vpop.f32.mrb[0].mxu0
        %v553 = vadd.f32 %v388, %v552
        %v554 = vpop.f32.mrb[0].mxu0
        %v555 = vadd.f32 %v392, %v554
        %556 = vdwg.mxu0
        %557 = vmatprep.subr.bf16.mxu0 %v481
        %558 = vmatpush1.bf16.msra.mxu0 %v480
        %559 = vmatprep.subr.bf16.mxu0 %v489
        %560 = vmatpush1.bf16.msra.mxu0 %v488
        %561 = vmatprep.subr.bf16.mxu0 0
        %562 = vmatpush1.bf16.msra.mxu0 0
        %563 = vmatprep.subr.bf16.mxu0 0
        %564 = vmatpush1.bf16.msra.mxu0 0
        %565 = vmatprep.subr.bf16.mxu0 0
        %566 = vmatpush1.bf16.msra.mxu0 0
        %567 = vmatprep.subr.bf16.mxu0 0
        %568 = vmatpush1.bf16.msra.mxu0 0
        %569 = vmatprep.subr.bf16.mxu0 0
        %570 = vmatpush1.bf16.msra.mxu0 0
        %571 = vmatprep.subr.bf16.mxu0 0
        %572 = vmatpush1.bf16.msra.mxu0 0
        %573 = vmatprep.subr.bf16.mxu0 0
        %574 = vmatpush1.bf16.msra.mxu0 0
        %575 = vmatprep.subr.bf16.mxu0 0
        %576 = vmatpush1.bf16.msra.mxu0 0
        %577 = vmatprep.subr.bf16.mxu0 0
        %578 = vmatpush1.bf16.msra.mxu0 0
        %579 = vmatprep.subr.bf16.mxu0 0
        %580 = vmatpush1.bf16.msra.mxu0 0
        %581 = vmatprep.subr.bf16.mxu0 0
        %582 = vmatpush1.bf16.msra.mxu0 0
        %583 = vmatprep.subr.bf16.mxu0 0
        %584 = vmatpush1.bf16.msra.mxu0 0
        %585 = vmatprep.subr.bf16.mxu0 0
        %586 = vmatpush1.bf16.msra.mxu0 0
        %587 = vmatprep.subr.bf16.mxu0 0
        %588 = vmatpush1.bf16.msra.mxu0 0
        %589 = vmatprep.mubr.bf16.mxu0 0
        %590 = vmatmul.mubr.bf16.gmra.mrb[0].mxu0 %v512
        %v591 = vpop.f32.mrb[0].mxu0
        %v592 = vadd.f32 %v396, %v591
        %v593 = vpop.f32.mrb[0].mxu0
        %v594 = vadd.f32 %v400, %v593
        %v595 = vpop.f32.mrb[0].mxu0
        %v596 = vadd.f32 %v396, %v595
        %v597 = vpop.f32.mrb[0].mxu0
        %v598 = vadd.f32 %v400, %v597
        %599 = vdwg.mxu0
        %600 = vmatprep.subr.bf16.mxu0 %v483
        %601 = vmatpush1.bf16.msra.mxu0 %v482
        %602 = vmatprep.subr.bf16.mxu0 %v491
        %603 = vmatpush1.bf16.msra.mxu0 %v490
        %604 = vmatprep.subr.bf16.mxu0 0
        %605 = vmatpush1.bf16.msra.mxu0 0
        %606 = vmatprep.subr.bf16.mxu0 0
        %607 = vmatpush1.bf16.msra.mxu0 0
        %608 = vmatprep.subr.bf16.mxu0 0
        %609 = vmatpush1.bf16.msra.mxu0 0
        %610 = vmatprep.subr.bf16.mxu0 0
        %611 = vmatpush1.bf16.msra.mxu0 0
        %612 = vmatprep.subr.bf16.mxu0 0
        %613 = vmatpush1.bf16.msra.mxu0 0
        %614 = vmatprep.subr.bf16.mxu0 0
        %615 = vmatpush1.bf16.msra.mxu0 0
        %616 = vmatprep.subr.bf16.mxu0 0
        %617 = vmatpush1.bf16.msra.mxu0 0
        %618 = vmatprep.subr.bf16.mxu0 0
        %619 = vmatpush1.bf16.msra.mxu0 0
        %620 = vmatprep.subr.bf16.mxu0 0
        %621 = vmatpush1.bf16.msra.mxu0 0
        %622 = vmatprep.subr.bf16.mxu0 0
        %623 = vmatpush1.bf16.msra.mxu0 0
        %624 = vmatprep.subr.bf16.mxu0 0
        %625 = vmatpush1.bf16.msra.mxu0 0
        %626 = vmatprep.subr.bf16.mxu0 0
        %627 = vmatpush1.bf16.msra.mxu0 0
        %628 = vmatprep.subr.bf16.mxu0 0
        %629 = vmatpush1.bf16.msra.mxu0 0
        %630 = vmatprep.subr.bf16.mxu0 0
        %631 = vmatpush1.bf16.msra.mxu0 0
        %632 = vmatprep.mubr.bf16.mxu0 0
        %633 = vmatmul.mubr.bf16.gmra.mrb[0].mxu0 %v512
        %v634 = vpop.f32.mrb[0].mxu0
        %v635 = vadd.f32 %v404, %v634
        %v636 = vpop.f32.mrb[0].mxu0
        %v637 = vadd.f32 %v408, %v636
        %v638 = vpop.f32.mrb[0].mxu0
        %v639 = vadd.f32 %v404, %v638
        %v640 = vpop.f32.mrb[0].mxu0
        %v641 = vadd.f32 %v408, %v640
        %642 = vdwg.mxu0
        %643 = vmatprep.subr.bf16.mxu0 %v485
        %644 = vmatpush1.bf16.msra.mxu0 %v484
        %645 = vmatprep.subr.bf16.mxu0 %v493
        %646 = vmatpush1.bf16.msra.mxu0 %v492
        %647 = vmatprep.subr.bf16.mxu0 0
        %648 = vmatpush1.bf16.msra.mxu0 0
        %649 = vmatprep.subr.bf16.mxu0 0
        %650 = vmatpush1.bf16.msra.mxu0 0
        %651 = vmatprep.subr.bf16.mxu0 0
        %652 = vmatpush1.bf16.msra.mxu0 0
        %653 = vmatprep.subr.bf16.mxu0 0
        %654 = vmatpush1.bf16.msra.mxu0 0
        %655 = vmatprep.subr.bf16.mxu0 0
        %656 = vmatpush1.bf16.msra.mxu0 0
        %657 = vmatprep.subr.bf16.mxu0 0
        %658 = vmatpush1.bf16.msra.mxu0 0
        %659 = vmatprep.subr.bf16.mxu0 0
        %660 = vmatpush1.bf16.msra.mxu0 0
        %661 = vmatprep.subr.bf16.mxu0 0
        %662 = vmatpush1.bf16.msra.mxu0 0
        %663 = vmatprep.subr.bf16.mxu0 0
        %664 = vmatpush1.bf16.msra.mxu0 0
        %665 = vmatprep.subr.bf16.mxu0 0
        %666 = vmatpush1.bf16.msra.mxu0 0
        %667 = vmatprep.subr.bf16.mxu0 0
        %668 = vmatpush1.bf16.msra.mxu0 0
        %669 = vmatprep.subr.bf16.mxu0 0
        %670 = vmatpush1.bf16.msra.mxu0 0
        %671 = vmatprep.subr.bf16.mxu0 0
        %672 = vmatpush1.bf16.msra.mxu0 0
        %673 = vmatprep.subr.bf16.mxu0 0
        %674 = vmatpush1.bf16.msra.mxu0 0
        %675 = vmatprep.mubr.bf16.mxu0 0
        %676 = vmatmul.mubr.bf16.gmra.mrb[0].mxu0 %v512
        %v677 = vpop.f32.mrb[0].mxu0
        %v678 = vadd.f32 %v412, %v677
        %v679 = vpop.f32.mrb[0].mxu0
        %v680 = vadd.f32 %v416, %v679
        %v681 = vpop.f32.mrb[0].mxu0
        %v682 = vadd.f32 %v412, %v681
        %v683 = vpop.f32.mrb[0].mxu0
        %v684 = vadd.f32 %v416, %v683
        %685 = vdwg.mxu0
        %v686 = vmax.f32 %v549, 0.0
        %v687 = vmax.f32 %v551, 0.0
        %v688 = vmax.f32 %v592, 0.0
        %v689 = vmax.f32 %v594, 0.0
        %v690 = vmax.f32 %v635, 0.0
        %v691 = vmax.f32 %v637, 0.0
        %v692 = vmax.f32 %v678, 0.0
        %v693 = vmax.f32 %v680, 0.0
        %v694 = vmax.f32 %v553, 0.0
        %v695 = vmax.f32 %v555, 0.0
        %v696 = vmax.f32 %v596, 0.0
        %v697 = vmax.f32 %v598, 0.0
        %v698 = vmax.f32 %v639, 0.0
        %v699 = vmax.f32 %v641, 0.0
        %v700 = vmax.f32 %v682, 0.0
        %v701 = vmax.f32 %v684, 0.0
        %v702 = vld [vmem:[#allocation10] sm:$0xff]
        %v703 = vld [vmem:[#allocation10 + $0x8] sm:$0xff]
        %v704 = vpack.c.bf16 %v694, %v686
        %v705 = vpack.c.bf16 %v695, %v687
        %v706 = vpack.c.bf16 %v696, %v688
        %v707 = vpack.c.bf16 %v697, %v689
        %v708 = vpack.c.bf16 %v698, %v690
        %v709 = vpack.c.bf16 %v699, %v691
        %v710 = vpack.c.bf16 %v700, %v692
        %v711 = vpack.c.bf16 %v701, %v693
        %v712 = vld [vmem:[%s314] sm:$0xf]
        %v713 = vld [vmem:[%s314 + $0x4] sm:$0xf]
        %v714 = vld [vmem:[%s314 + $0x8] sm:$0xf]
        %v715 = vld [vmem:[%s314 + $0xc] sm:$0xf]
        %v716 = vld [vmem:[%s314 + $0x10] sm:$0xf]
        %v717 = vld [vmem:[%s314 + $0x14] sm:$0xf]
        %v718 = vld [vmem:[%s314 + $0x18] sm:$0xf]
        %v719 = vld [vmem:[%s314 + $0x1c] sm:$0xf]
        %v720 = vld [vmem:[%s314 + $0x20] sm:$0xf]
        %v721 = vld [vmem:[%s314 + $0x24] sm:$0xf]
        %v722 = vld [vmem:[%s314 + $0x28] sm:$0xf]
        %v723 = vld [vmem:[%s314 + $0x2c] sm:$0xf]
        %v724 = vld [vmem:[%s314 + $0x30] sm:$0xf]
        %v725 = vld [vmem:[%s314 + $0x34] sm:$0xf]
        %v726 = vld [vmem:[%s314 + $0x38] sm:$0xf]
        %v727 = vld [vmem:[%s314 + $0x3c] sm:$0xf]
        %v728 = vld [vmem:[%s314 + $0x40] sm:$0xf]
        %v729 = vld [vmem:[%s314 + $0x44] sm:$0xf]
        %v730 = vld [vmem:[%s314 + $0x48] sm:$0xf]
        %v731 = vld [vmem:[%s314 + $0x4c] sm:$0xf]
        %v732 = vld [vmem:[%s314 + $0x50] sm:$0xf]
        %v733 = vld [vmem:[%s314 + $0x54] sm:$0xf]
        %v734 = vld [vmem:[%s314 + $0x58] sm:$0xf]
        %v735 = vld [vmem:[%s314 + $0x5c] sm:$0xf]
        %v736 = vld [vmem:[%s314 + $0x60] sm:$0xf]
        %v737 = vld [vmem:[%s314 + $0x64] sm:$0xf]
        %v738 = vld [vmem:[%s314 + $0x68] sm:$0xf]
        %v739 = vld [vmem:[%s314 + $0x6c] sm:$0xf]
        %v740 = vld [vmem:[%s314 + $0x70] sm:$0xf]
        %v741 = vld [vmem:[%s314 + $0x74] sm:$0xf]
        %v742 = vld [vmem:[%s314 + $0x78] sm:$0xf]
        %v743 = vld [vmem:[%s314 + $0x7c] sm:$0xf]
        %v744 = vld [vmem:[%s314 + $0x80] sm:$0xf]
        %v745 = vld [vmem:[%s314 + $0x84] sm:$0xf]
        %v746 = vld [vmem:[%s314 + $0x88] sm:$0xf]
        %v747 = vld [vmem:[%s314 + $0x8c] sm:$0xf]
        %v748 = vld [vmem:[%s314 + $0x90] sm:$0xf]
        %v749 = vld [vmem:[%s314 + $0x94] sm:$0xf]
        %v750 = vld [vmem:[%s314 + $0x98] sm:$0xf]
        %v751 = vld [vmem:[%s314 + $0x9c] sm:$0xf]
        %v752 = vld [vmem:[%s314 + $0xa0] sm:$0xf]
        %v753 = vld [vmem:[%s314 + $0xa4] sm:$0xf]
        %v754 = vld [vmem:[%s314 + $0xa8] sm:$0xf]
        %v755 = vld [vmem:[%s314 + $0xac] sm:$0xf]
        %v756 = vld [vmem:[%s314 + $0xb0] sm:$0xf]
        %v757 = vld [vmem:[%s314 + $0xb4] sm:$0xf]
        %v758 = vld [vmem:[%s314 + $0xb8] sm:$0xf]
        %v759 = vld [vmem:[%s314 + $0xbc] sm:$0xf]
        %v760 = vld [vmem:[%s314 + $0xc0] sm:$0xf]
        %v761 = vld [vmem:[%s314 + $0xc4] sm:$0xf]
        %v762 = vld [vmem:[%s314 + $0xc8] sm:$0xf]
        %v763 = vld [vmem:[%s314 + $0xcc] sm:$0xf]
        %v764 = vld [vmem:[%s314 + $0xd0] sm:$0xf]
        %v765 = vld [vmem:[%s314 + $0xd4] sm:$0xf]
        %v766 = vld [vmem:[%s314 + $0xd8] sm:$0xf]
        %v767 = vld [vmem:[%s314 + $0xdc] sm:$0xf]
        %v768 = vld [vmem:[%s314 + $0xe0] sm:$0xf]
        %v769 = vld [vmem:[%s314 + $0xe4] sm:$0xf]
        %v770 = vld [vmem:[%s314 + $0xe8] sm:$0xf]
        %v771 = vld [vmem:[%s314 + $0xec] sm:$0xf]
        %v772 = vld [vmem:[%s314 + $0xf0] sm:$0xf]
        %v773 = vld [vmem:[%s314 + $0xf4] sm:$0xf]
        %v774 = vld [vmem:[%s314 + $0xf8] sm:$0xf]
        %v775 = vld [vmem:[%s314 + $0xfc] sm:$0xf]
        %v776 = vld [vmem:[%s314 + $0x100] sm:$0xf]
        %v777 = vld [vmem:[%s314 + $0x104] sm:$0xf]
        %v778 = vld [vmem:[%s314 + $0x108] sm:$0xf]
        %v779 = vld [vmem:[%s314 + $0x10c] sm:$0xf]
        %v780 = vld [vmem:[%s314 + $0x110] sm:$0xf]
        %v781 = vld [vmem:[%s314 + $0x114] sm:$0xf]
        %v782 = vld [vmem:[%s314 + $0x118] sm:$0xf]
        %v783 = vld [vmem:[%s314 + $0x11c] sm:$0xf]
        %v784 = vld [vmem:[%s314 + $0x120] sm:$0xf]
        %v785 = vld [vmem:[%s314 + $0x124] sm:$0xf]
        %v786 = vld [vmem:[%s314 + $0x128] sm:$0xf]
        %v787 = vld [vmem:[%s314 + $0x12c] sm:$0xf]
        %v788 = vld [vmem:[%s314 + $0x130] sm:$0xf]
        %v789 = vld [vmem:[%s314 + $0x134] sm:$0xf]
        %v790 = vld [vmem:[%s314 + $0x138] sm:$0xf]
        %v791 = vld [vmem:[%s314 + $0x13c] sm:$0xf]
        %v792 = vld [vmem:[%s314 + $0x140] sm:$0xf]
        %v793 = vld [vmem:[%s314 + $0x144] sm:$0xf]
        %v794 = vld [vmem:[%s314 + $0x148] sm:$0xf]
        %v795 = vld [vmem:[%s314 + $0x14c] sm:$0xf]
        %v796 = vld [vmem:[%s314 + $0x150] sm:$0xf]
        %v797 = vld [vmem:[%s314 + $0x154] sm:$0xf]
        %v798 = vld [vmem:[%s314 + $0x158] sm:$0xf]
        %v799 = vld [vmem:[%s314 + $0x15c] sm:$0xf]
        %v800 = vld [vmem:[%s314 + $0x160] sm:$0xf]
        %v801 = vld [vmem:[%s314 + $0x164] sm:$0xf]
        %v802 = vld [vmem:[%s314 + $0x168] sm:$0xf]
        %v803 = vld [vmem:[%s314 + $0x16c] sm:$0xf]
        %v804 = vld [vmem:[%s314 + $0x170] sm:$0xf]
        %v805 = vld [vmem:[%s314 + $0x174] sm:$0xf]
        %v806 = vld [vmem:[%s314 + $0x178] sm:$0xf]
        %v807 = vld [vmem:[%s314 + $0x17c] sm:$0xf]
        %v808 = vld [vmem:[%s314 + $0x180] sm:$0xf]
        %v809 = vld [vmem:[%s314 + $0x184] sm:$0xf]
        %v810 = vld [vmem:[%s314 + $0x188] sm:$0xf]
        %v811 = vld [vmem:[%s314 + $0x18c] sm:$0xf]
        %v812 = vld [vmem:[%s314 + $0x190] sm:$0xf]
        %v813 = vld [vmem:[%s314 + $0x194] sm:$0xf]
        %v814 = vld [vmem:[%s314 + $0x198] sm:$0xf]
        %v815 = vld [vmem:[%s314 + $0x19c] sm:$0xf]
        %v816 = vld [vmem:[%s314 + $0x1a0] sm:$0xf]
        %v817 = vld [vmem:[%s314 + $0x1a4] sm:$0xf]
        %v818 = vld [vmem:[%s314 + $0x1a8] sm:$0xf]
        %v819 = vld [vmem:[%s314 + $0x1ac] sm:$0xf]
        %v820 = vld [vmem:[%s314 + $0x1b0] sm:$0xf]
        %v821 = vld [vmem:[%s314 + $0x1b4] sm:$0xf]
        %v822 = vld [vmem:[%s314 + $0x1b8] sm:$0xf]
        %v823 = vld [vmem:[%s314 + $0x1bc] sm:$0xf]
        %v824 = vld [vmem:[%s314 + $0x1c0] sm:$0xf]
        %v825 = vld [vmem:[%s314 + $0x1c4] sm:$0xf]
        %v826 = vld [vmem:[%s314 + $0x1c8] sm:$0xf]
        %v827 = vld [vmem:[%s314 + $0x1cc] sm:$0xf]
        %v828 = vld [vmem:[%s314 + $0x1d0] sm:$0xf]
        %v829 = vld [vmem:[%s314 + $0x1d4] sm:$0xf]
        %v830 = vld [vmem:[%s314 + $0x1d8] sm:$0xf]
        %v831 = vld [vmem:[%s314 + $0x1dc] sm:$0xf]
        %v832 = vld [vmem:[%s314 + $0x1e0] sm:$0xf]
        %v833 = vld [vmem:[%s314 + $0x1e4] sm:$0xf]
        %v834 = vld [vmem:[%s314 + $0x1e8] sm:$0xf]
        %v835 = vld [vmem:[%s314 + $0x1ec] sm:$0xf]
        %v836 = vld [vmem:[%s314 + $0x1f0] sm:$0xf]
        %v837 = vld [vmem:[%s314 + $0x1f4] sm:$0xf]
        %v838 = vld [vmem:[%s314 + $0x1f8] sm:$0xf]
        %v839 = vld [vmem:[%s314 + $0x1fc] sm:$0xf]
        %v968 = vunpack.c.l.b16 %v712
        %v969 = vunpack.c.l.b16 %v713
        %v970 = vunpack.c.l.b16 %v714
        %v971 = vunpack.c.l.b16 %v715
        %v972 = vunpack.c.l.b16 %v716
        %v973 = vunpack.c.l.b16 %v717
        %v974 = vunpack.c.l.b16 %v718
        %v975 = vunpack.c.l.b16 %v719
        %v976 = vunpack.c.l.b16 %v720
        %v977 = vunpack.c.l.b16 %v721
        %v978 = vunpack.c.l.b16 %v722
        %v979 = vunpack.c.l.b16 %v723
        %v980 = vunpack.c.l.b16 %v724
        %v981 = vunpack.c.l.b16 %v725
        %v982 = vunpack.c.l.b16 %v726
        %v983 = vunpack.c.l.b16 %v727
        %v984 = vunpack.c.l.b16 %v728
        %v985 = vunpack.c.l.b16 %v729
        %v986 = vunpack.c.l.b16 %v730
        %v987 = vunpack.c.l.b16 %v731
        %v988 = vunpack.c.l.b16 %v732
        %v989 = vunpack.c.l.b16 %v733
        %v990 = vunpack.c.l.b16 %v734
        %v991 = vunpack.c.l.b16 %v735
        %v992 = vunpack.c.l.b16 %v736
        %v993 = vunpack.c.l.b16 %v737
        %v994 = vunpack.c.l.b16 %v738
        %v995 = vunpack.c.l.b16 %v739
        %v996 = vunpack.c.l.b16 %v740
        %v997 = vunpack.c.l.b16 %v741
        %v998 = vunpack.c.l.b16 %v742
        %v999 = vunpack.c.l.b16 %v743
        %v1000 = vunpack.c.l.b16 %v744
        %v1001 = vunpack.c.l.b16 %v745
        %v1002 = vunpack.c.l.b16 %v746
        %v1003 = vunpack.c.l.b16 %v747
        %v1004 = vunpack.c.l.b16 %v748
        %v1005 = vunpack.c.l.b16 %v749
        %v1006 = vunpack.c.l.b16 %v750
        %v1007 = vunpack.c.l.b16 %v751
        %v1008 = vunpack.c.l.b16 %v752
        %v1009 = vunpack.c.l.b16 %v753
        %v1010 = vunpack.c.l.b16 %v754
        %v1011 = vunpack.c.l.b16 %v755
        %v1012 = vunpack.c.l.b16 %v756
        %v1013 = vunpack.c.l.b16 %v757
        %v1014 = vunpack.c.l.b16 %v758
        %v1015 = vunpack.c.l.b16 %v759
        %v1016 = vunpack.c.l.b16 %v760
        %v1017 = vunpack.c.l.b16 %v761
        %v1018 = vunpack.c.l.b16 %v762
        %v1019 = vunpack.c.l.b16 %v763
        %v1020 = vunpack.c.l.b16 %v764
        %v1021 = vunpack.c.l.b16 %v765
        %v1022 = vunpack.c.l.b16 %v766
        %v1023 = vunpack.c.l.b16 %v767
        %v1024 = vunpack.c.l.b16 %v768
        %v1025 = vunpack.c.l.b16 %v769
        %v1026 = vunpack.c.l.b16 %v770
        %v1027 = vunpack.c.l.b16 %v771
        %v1028 = vunpack.c.l.b16 %v772
        %v1029 = vunpack.c.l.b16 %v773
        %v1030 = vunpack.c.l.b16 %v774
        %v1031 = vunpack.c.l.b16 %v775
        %v1032 = vunpack.c.l.b16 %v776
        %v1033 = vunpack.c.l.b16 %v777
        %v1034 = vunpack.c.l.b16 %v778
        %v1035 = vunpack.c.l.b16 %v779
        %v1036 = vunpack.c.l.b16 %v780
        %v1037 = vunpack.c.l.b16 %v781
        %v1038 = vunpack.c.l.b16 %v782
        %v1039 = vunpack.c.l.b16 %v783
        %v1040 = vunpack.c.l.b16 %v784
        %v1041 = vunpack.c.l.b16 %v785
        %v1042 = vunpack.c.l.b16 %v786
        %v1043 = vunpack.c.l.b16 %v787
        %v1044 = vunpack.c.l.b16 %v788
        %v1045 = vunpack.c.l.b16 %v789
        %v1046 = vunpack.c.l.b16 %v790
        %v1047 = vunpack.c.l.b16 %v791
        %v1048 = vunpack.c.l.b16 %v792
        %v1049 = vunpack.c.l.b16 %v793
        %v1050 = vunpack.c.l.b16 %v794
        %v1051 = vunpack.c.l.b16 %v795
        %v1052 = vunpack.c.l.b16 %v796
        %v1053 = vunpack.c.l.b16 %v797
        %v1054 = vunpack.c.l.b16 %v798
        %v1055 = vunpack.c.l.b16 %v799
        %v1056 = vunpack.c.l.b16 %v800
        %v1057 = vunpack.c.l.b16 %v801
        %v1058 = vunpack.c.l.b16 %v802
        %v1059 = vunpack.c.l.b16 %v803
        %v1060 = vunpack.c.l.b16 %v804
        %v1061 = vunpack.c.l.b16 %v805
        %v1062 = vunpack.c.l.b16 %v806
        %v1063 = vunpack.c.l.b16 %v807
        %v1064 = vunpack.c.l.b16 %v808
        %v1065 = vunpack.c.l.b16 %v809
        %v1066 = vunpack.c.l.b16 %v810
        %v1067 = vunpack.c.l.b16 %v811
        %v1068 = vunpack.c.l.b16 %v812
        %v1069 = vunpack.c.l.b16 %v813
        %v1070 = vunpack.c.l.b16 %v814
        %v1071 = vunpack.c.l.b16 %v815
        %v1072 = vunpack.c.l.b16 %v816
        %v1073 = vunpack.c.l.b16 %v817
        %v1074 = vunpack.c.l.b16 %v818
        %v1075 = vunpack.c.l.b16 %v819
        %v1076 = vunpack.c.l.b16 %v820
        %v1077 = vunpack.c.l.b16 %v821
        %v1078 = vunpack.c.l.b16 %v822
        %v1079 = vunpack.c.l.b16 %v823
        %v1080 = vunpack.c.l.b16 %v824
        %v1081 = vunpack.c.l.b16 %v825
        %v1082 = vunpack.c.l.b16 %v826
        %v1083 = vunpack.c.l.b16 %v827
        %v1084 = vunpack.c.l.b16 %v828
        %v1085 = vunpack.c.l.b16 %v829
        %v1086 = vunpack.c.l.b16 %v830
        %v1087 = vunpack.c.l.b16 %v831
        %v1088 = vunpack.c.l.b16 %v832
        %v1089 = vunpack.c.l.b16 %v833
        %v1090 = vunpack.c.l.b16 %v834
        %v1091 = vunpack.c.l.b16 %v835
        %v1092 = vunpack.c.l.b16 %v836
        %v1093 = vunpack.c.l.b16 %v837
        %v1094 = vunpack.c.l.b16 %v838
        %v1095 = vunpack.c.l.b16 %v839
        %v1096 = vpack.c.b16 %v969, %v968
        %v1097 = vpack.c.b16 %v971, %v970
        %v1098 = vpack.c.b16 %v973, %v972
        %v1099 = vpack.c.b16 %v975, %v974
        %v1100 = vpack.c.b16 %v977, %v976
        %v1101 = vpack.c.b16 %v979, %v978
        %v1102 = vpack.c.b16 %v981, %v980
        %v1103 = vpack.c.b16 %v983, %v982
        %v1104 = vpack.c.b16 %v985, %v984
        %v1105 = vpack.c.b16 %v987, %v986
        %v1106 = vpack.c.b16 %v989, %v988
        %v1107 = vpack.c.b16 %v991, %v990
        %v1108 = vpack.c.b16 %v993, %v992
        %v1109 = vpack.c.b16 %v995, %v994
        %v1110 = vpack.c.b16 %v997, %v996
        %v1111 = vpack.c.b16 %v999, %v998
        %v1112 = vpack.c.b16 %v1001, %v1000
        %v1113 = vpack.c.b16 %v1003, %v1002
        %v1114 = vpack.c.b16 %v1005, %v1004
        %v1115 = vpack.c.b16 %v1007, %v1006
        %v1116 = vpack.c.b16 %v1009, %v1008
        %v1117 = vpack.c.b16 %v1011, %v1010
        %v1118 = vpack.c.b16 %v1013, %v1012
        %v1119 = vpack.c.b16 %v1015, %v1014
        %v1120 = vpack.c.b16 %v1017, %v1016
        %v1121 = vpack.c.b16 %v1019, %v1018
        %v1122 = vpack.c.b16 %v1021, %v1020
        %v1123 = vpack.c.b16 %v1023, %v1022
        %v1124 = vpack.c.b16 %v1025, %v1024
        %v1125 = vpack.c.b16 %v1027, %v1026
        %v1126 = vpack.c.b16 %v1029, %v1028
        %v1127 = vpack.c.b16 %v1031, %v1030
        %v1128 = vpack.c.b16 %v1033, %v1032
        %v1129 = vpack.c.b16 %v1035, %v1034
        %v1130 = vpack.c.b16 %v1037, %v1036
        %v1131 = vpack.c.b16 %v1039, %v1038
        %v1132 = vpack.c.b16 %v1041, %v1040
        %v1133 = vpack.c.b16 %v1043, %v1042
        %v1134 = vpack.c.b16 %v1045, %v1044
        %v1135 = vpack.c.b16 %v1047, %v1046
        %v1136 = vpack.c.b16 %v1049, %v1048
        %v1137 = vpack.c.b16 %v1051, %v1050
        %v1138 = vpack.c.b16 %v1053, %v1052
        %v1139 = vpack.c.b16 %v1055, %v1054
        %v1140 = vpack.c.b16 %v1057, %v1056
        %v1141 = vpack.c.b16 %v1059, %v1058
        %v1142 = vpack.c.b16 %v1061, %v1060
        %v1143 = vpack.c.b16 %v1063, %v1062
        %v1144 = vpack.c.b16 %v1065, %v1064
        %v1145 = vpack.c.b16 %v1067, %v1066
        %v1146 = vpack.c.b16 %v1069, %v1068
        %v1147 = vpack.c.b16 %v1071, %v1070
        %v1148 = vpack.c.b16 %v1073, %v1072
        %v1149 = vpack.c.b16 %v1075, %v1074
        %v1150 = vpack.c.b16 %v1077, %v1076
        %v1151 = vpack.c.b16 %v1079, %v1078
        %v1152 = vpack.c.b16 %v1081, %v1080
        %v1153 = vpack.c.b16 %v1083, %v1082
        %v1154 = vpack.c.b16 %v1085, %v1084
        %v1155 = vpack.c.b16 %v1087, %v1086
        %v1156 = vpack.c.b16 %v1089, %v1088
        %v1157 = vpack.c.b16 %v1091, %v1090
        %v1158 = vpack.c.b16 %v1093, %v1092
        %v1159 = vpack.c.b16 %v1095, %v1094
        %1224 = vmatprep.subr.bf16.mxu0 0
        %1225 = vmatpush1.bf16.msra.mxu0 %v1096
        %1226 = vmatprep.subr.bf16.mxu0 0
        %1227 = vmatpush1.bf16.msra.mxu0 %v1097
        %1228 = vmatprep.subr.bf16.mxu0 0
        %1229 = vmatpush1.bf16.msra.mxu0 %v1098
        %1230 = vmatprep.subr.bf16.mxu0 0
        %1231 = vmatpush1.bf16.msra.mxu0 %v1099
        %1232 = vmatprep.subr.bf16.mxu0 0
        %1233 = vmatpush1.bf16.msra.mxu0 %v1100
        %1234 = vmatprep.subr.bf16.mxu0 0
        %1235 = vmatpush1.bf16.msra.mxu0 %v1101
        %1236 = vmatprep.subr.bf16.mxu0 0
        %1237 = vmatpush1.bf16.msra.mxu0 %v1102
        %1238 = vmatprep.subr.bf16.mxu0 0
        %1239 = vmatpush1.bf16.msra.mxu0 %v1103
        %1240 = vmatprep.subr.bf16.mxu0 0
        %1241 = vmatpush1.bf16.msra.mxu0 %v1104
        %1242 = vmatprep.subr.bf16.mxu0 0
        %1243 = vmatpush1.bf16.msra.mxu0 %v1105
        %1244 = vmatprep.subr.bf16.mxu0 0
        %1245 = vmatpush1.bf16.msra.mxu0 %v1106
        %1246 = vmatprep.subr.bf16.mxu0 0
        %1247 = vmatpush1.bf16.msra.mxu0 %v1107
        %1248 = vmatprep.subr.bf16.mxu0 0
        %1249 = vmatpush1.bf16.msra.mxu0 %v1108
        %1250 = vmatprep.subr.bf16.mxu0 0
        %1251 = vmatpush1.bf16.msra.mxu0 %v1109
        %1252 = vmatprep.subr.bf16.mxu0 0
        %1253 = vmatpush1.bf16.msra.mxu0 %v1110
        %1254 = vmatprep.subr.bf16.mxu0 0
        %1255 = vmatpush1.bf16.msra.mxu0 %v1111
        %1256 = vmatprep.mubr.bf16.mxu0 %v705
        %1257 = vmatmul.mubr.bf16.gmra.mrb[0].mxu0 %v704
        %v1258 = vpop.f32.mrb[0].mxu0
        %v1259 = vadd.f32 0.0, %v1258
        %v1260 = vpop.f32.mrb[0].mxu0
        %v1261 = vpop.f32.mrb[0].mxu0
        %v1262 = vadd.f32 0.0, %v1261
        %v1263 = vpop.f32.mrb[0].mxu0
        %1264 = vdwg.mxu0
        %1265 = vmatprep.subr.bf16.mxu0 0
        %1266 = vmatpush1.bf16.msra.mxu0 %v1112
        %1267 = vmatprep.subr.bf16.mxu0 0
        %1268 = vmatpush1.bf16.msra.mxu0 %v1113
        %1269 = vmatprep.subr.bf16.mxu0 0
        %1270 = vmatpush1.bf16.msra.mxu0 %v1114
        %1271 = vmatprep.subr.bf16.mxu0 0
        %1272 = vmatpush1.bf16.msra.mxu0 %v1115
        %1273 = vmatprep.subr.bf16.mxu0 0
        %1274 = vmatpush1.bf16.msra.mxu0 %v1116
        %1275 = vmatprep.subr.bf16.mxu0 0
        %1276 = vmatpush1.bf16.msra.mxu0 %v1117
        %1277 = vmatprep.subr.bf16.mxu0 0
        %1278 = vmatpush1.bf16.msra.mxu0 %v1118
        %1279 = vmatprep.subr.bf16.mxu0 0
        %1280 = vmatpush1.bf16.msra.mxu0 %v1119
        %1281 = vmatprep.subr.bf16.mxu0 0
        %1282 = vmatpush1.bf16.msra.mxu0 %v1120
        %1283 = vmatprep.subr.bf16.mxu0 0
        %1284 = vmatpush1.bf16.msra.mxu0 %v1121
        %1285 = vmatprep.subr.bf16.mxu0 0
        %1286 = vmatpush1.bf16.msra.mxu0 %v1122
        %1287 = vmatprep.subr.bf16.mxu0 0
        %1288 = vmatpush1.bf16.msra.mxu0 %v1123
        %1289 = vmatprep.subr.bf16.mxu0 0
        %1290 = vmatpush1.bf16.msra.mxu0 %v1124
        %1291 = vmatprep.subr.bf16.mxu0 0
        %1292 = vmatpush1.bf16.msra.mxu0 %v1125
        %1293 = vmatprep.subr.bf16.mxu0 0
        %1294 = vmatpush1.bf16.msra.mxu0 %v1126
        %1295 = vmatprep.subr.bf16.mxu0 0
        %1296 = vmatpush1.bf16.msra.mxu0 %v1127
        %1297 = vmatprep.mubr.bf16.mxu0 %v707
        %1298 = vmatmul.mubr.bf16.gmra.mrb[0].mxu0 %v706
        %v1299 = vpop.f32.mrb[0].mxu0
        %v1300 = vadd.f32 %v1259, %v1299
        %v1301 = vpop.f32.mrb[0].mxu0
        %v1302 = vpop.f32.mrb[0].mxu0
        %v1303 = vadd.f32 %v1262, %v1302
        %v1304 = vpop.f32.mrb[0].mxu0
        %1305 = vdwg.mxu0
        %1306 = vmatprep.subr.bf16.mxu0 0
        %1307 = vmatpush1.bf16.msra.mxu0 %v1128
        %1308 = vmatprep.subr.bf16.mxu0 0
        %1309 = vmatpush1.bf16.msra.mxu0 %v1129
        %1310 = vmatprep.subr.bf16.mxu0 0
        %1311 = vmatpush1.bf16.msra.mxu0 %v1130
        %1312 = vmatprep.subr.bf16.mxu0 0
        %1313 = vmatpush1.bf16.msra.mxu0 %v1131
        %1314 = vmatprep.subr.bf16.mxu0 0
        %1315 = vmatpush1.bf16.msra.mxu0 %v1132
        %1316 = vmatprep.subr.bf16.mxu0 0
        %1317 = vmatpush1.bf16.msra.mxu0 %v1133
        %1318 = vmatprep.subr.bf16.mxu0 0
        %1319 = vmatpush1.bf16.msra.mxu0 %v1134
        %1320 = vmatprep.subr.bf16.mxu0 0
        %1321 = vmatpush1.bf16.msra.mxu0 %v1135
        %1322 = vmatprep.subr.bf16.mxu0 0
        %1323 = vmatpush1.bf16.msra.mxu0 %v1136
        %1324 = vmatprep.subr.bf16.mxu0 0
        %1325 = vmatpush1.bf16.msra.mxu0 %v1137
        %1326 = vmatprep.subr.bf16.mxu0 0
        %1327 = vmatpush1.bf16.msra.mxu0 %v1138
        %1328 = vmatprep.subr.bf16.mxu0 0
        %1329 = vmatpush1.bf16.msra.mxu0 %v1139
        %1330 = vmatprep.subr.bf16.mxu0 0
        %1331 = vmatpush1.bf16.msra.mxu0 %v1140
        %1332 = vmatprep.subr.bf16.mxu0 0
        %1333 = vmatpush1.bf16.msra.mxu0 %v1141
        %1334 = vmatprep.subr.bf16.mxu0 0
        %1335 = vmatpush1.bf16.msra.mxu0 %v1142
        %1336 = vmatprep.subr.bf16.mxu0 0
        %1337 = vmatpush1.bf16.msra.mxu0 %v1143
        %1338 = vmatprep.mubr.bf16.mxu0 %v709
        %1339 = vmatmul.mubr.bf16.gmra.mrb[0].mxu0 %v708
        %v1340 = vpop.f32.mrb[0].mxu0
        %v1341 = vadd.f32 %v1300, %v1340
        %v1342 = vpop.f32.mrb[0].mxu0
        %v1343 = vpop.f32.mrb[0].mxu0
        %v1344 = vadd.f32 %v1303, %v1343
        %v1345 = vpop.f32.mrb[0].mxu0
        %1346 = vdwg.mxu0
        %1347 = vmatprep.subr.bf16.mxu0 0
        %1348 = vmatpush1.bf16.msra.mxu0 %v1144
        %1349 = vmatprep.subr.bf16.mxu0 0
        %1350 = vmatpush1.bf16.msra.mxu0 %v1145
        %1351 = vmatprep.subr.bf16.mxu0 0
        %1352 = vmatpush1.bf16.msra.mxu0 %v1146
        %1353 = vmatprep.subr.bf16.mxu0 0
        %1354 = vmatpush1.bf16.msra.mxu0 %v1147
        %1355 = vmatprep.subr.bf16.mxu0 0
        %1356 = vmatpush1.bf16.msra.mxu0 %v1148
        %1357 = vmatprep.subr.bf16.mxu0 0
        %1358 = vmatpush1.bf16.msra.mxu0 %v1149
        %1359 = vmatprep.subr.bf16.mxu0 0
        %1360 = vmatpush1.bf16.msra.mxu0 %v1150
        %1361 = vmatprep.subr.bf16.mxu0 0
        %1362 = vmatpush1.bf16.msra.mxu0 %v1151
        %1363 = vmatprep.subr.bf16.mxu0 0
        %1364 = vmatpush1.bf16.msra.mxu0 %v1152
        %1365 = vmatprep.subr.bf16.mxu0 0
        %1366 = vmatpush1.bf16.msra.mxu0 %v1153
        %1367 = vmatprep.subr.bf16.mxu0 0
        %1368 = vmatpush1.bf16.msra.mxu0 %v1154
        %1369 = vmatprep.subr.bf16.mxu0 0
        %1370 = vmatpush1.bf16.msra.mxu0 %v1155
        %1371 = vmatprep.subr.bf16.mxu0 0
        %1372 = vmatpush1.bf16.msra.mxu0 %v1156
        %1373 = vmatprep.subr.bf16.mxu0 0
        %1374 = vmatpush1.bf16.msra.mxu0 %v1157
        %1375 = vmatprep.subr.bf16.mxu0 0
        %1376 = vmatpush1.bf16.msra.mxu0 %v1158
        %1377 = vmatprep.subr.bf16.mxu0 0
        %1378 = vmatpush1.bf16.msra.mxu0 %v1159
        %1379 = vmatprep.mubr.bf16.mxu0 %v711
        %1380 = vmatmul.mubr.bf16.gmra.mrb[0].mxu0 %v710
        %v1381 = vpop.f32.mrb[0].mxu0
        %v1382 = vadd.f32 %v1341, %v1381
        %v1383 = vpop.f32.mrb[0].mxu0
        %v1384 = vpop.f32.mrb[0].mxu0
        %v1385 = vadd.f32 %v1344, %v1384
        %v1386 = vpop.f32.mrb[0].mxu0
        %1387 = vdwg.mxu0
        %v1388 = vadd.f32 %v702, %v1382
        %v1389 = vadd.f32 %v703, %v1385
        %1390 = vst [vmem:[#allocation10] sm:$0xff] %v1388
        %1391 = vst [vmem:[#allocation10 + $0x8] sm:$0xff] %v1389
        // Predicated region
        $region61: #{tpu_custom_call.1} parent=39 // pred_check
          %p1392 = pneg %p179
        $region62: #{tpu_custom_call.1} parent=39 // pred_check_branch
          %1394 = sbr.rel (%p1392) target = $region64
        $region63: #{tpu_custom_call.1} parent=39 // pred_region
          %s1395 = smul.u32 2, %s28
          %s1397 = ssub.s32 256, 256
          %1398 = vsyncadd [#allocation4], %s1397
          %s1399 = smul.addr %s1395, 128
          %s1400 = scalar_lea.hbm %s5, %s1399
          %s1401 = sshll.u32 [#allocation10], 4
          %s1402 = int_to_ptr.vmem [resolvable:$true] %s1401
          %1407 = dma.vmem_to_hbm [thread:$0]  %s1402, 256, %s1400, [#allocation4], 128, 128, 8
        $region64: #{tpu_custom_call.1} parent=39 // pred_fallthru
          _
        // Predicated region
        $region65: #{tpu_custom_call.1} parent=39 // pred_check
          %p1408 = pneg %p179
        $region66: #{tpu_custom_call.1} parent=39 // pred_check_branch
          %1410 = sbr.rel (%p1408) target = $region68
        $region67: #{tpu_custom_call.1} parent=39 // pred_region
          %1411 = dma.done [#allocation4], 256
        $region68: #{tpu_custom_call.1} parent=39 // pred_fallthru
          _
      $region40: #{tpu_custom_call.1} parent=5 // pred_fallthru
        _
      %p1412 = scmp.le.s32.totalorder 2, %s19
      // Predicated region
      $region69: #{tpu_custom_call.1} parent=5 // pred_check
        %p1413 = pneg %p1412
      $region70: #{tpu_custom_call.1} parent=5 // pred_check_branch
        %1415 = sbr.rel (%p1413) target = $region72
      $region71: #{tpu_custom_call.1} parent=5 // pred_region
        %s1416 = ssub.s32 %s19, 2
      $region72: #{tpu_custom_call.1} parent=5 // pred_fallthru
        _
    $region6: #{tpu_custom_call.1} parent=1 // loop_footer
      %s23 = sadd.s32 1, %s19
    $region7: #{tpu_custom_call.1} parent=1 // loop_footer_branch
      %18 = sbr.rel target = $region3
    $region8: #{tpu_custom_call.1} parent=1 // loop_exit
      _
    %1417 = vsyncpa [#allocation3], 1
    %s1418 = scalar_lea.sflag [#allocation3], 1
    %1419 = vsyncpa %s1418, 1
    %1420 = vsyncpa [#allocation6], 1
    %s1421 = scalar_lea.sflag [#allocation6], 1
    %1422 = vsyncpa %s1421, 1
    %1423 = vsyncpa [#allocation9], 1
    %s1424 = scalar_lea.sflag [#allocation9], 1
    %1425 = vsyncpa %s1424, 1
    %1426 = vsyncpa [#allocation4], 1
    %s1427 = scalar_lea.sflag [#allocation4], 1
    %1428 = vsyncpa %s1427, 1

</llo_original>
